<compile_context>
chip_gen: v5e
topology: v5e:2x2
jax: 0.10.0
libtpu: 0.0.40
codegen_flags: <defaults>
</compile_context>

<pallas_src>
import jax
import jax.numpy as jnp
from jax.experimental import pallas as pl
from jax.experimental.pallas import tpu as pltpu


def _score_pool_kernel(pt_ref, diff_ref, out_ref, acc_ref):
    # pt_ref  : (L, Nb, TS, D)  per-layer patch tokens, native dtype (no upcast)
    # diff_ref: (Nb, TS) f32    mean over anomaly maps of (class1 - class0) logit
    # out_ref : (Nb, D)         L2-normalized pooled class embedding
    # acc_ref : (Nb, D) f32     running weighted sum across S tiles
    s = pl.program_id(1)

    @pl.when(s == 0)
    def _init():
        acc_ref[...] = jnp.zeros_like(acc_ref)

    L = pt_ref.shape[0]

    # Class-1 probability of the 2-class softmax of the map-mean logits:
    #   softmax([l0, l1])[1] == sigmoid(l1 - l0) == 1 / (1 + exp(-(l1 - l0)))
    # exp(-diff) may overflow to +inf for very negative diff; 1/(1+inf) == 0 is
    # the correct IEEE limit of the softmax -- intentional, do not "fix".
    # The 1/L layer-mean is folded into the weight row.
    w = (1.0 / L) / (1.0 + jnp.exp(-diff_ref[...]))          # (Nb, TS) f32
    # NOTE: for bf16 patch tokens the weight is quantized to bf16 before the
    # MXU, so agreement with an f32 reference is only ~bf16-level in that case
    # (f32 inputs stay within 1e-5 of the reference).
    w = w.astype(pt_ref.dtype)[:, None, :]                   # (Nb, 1, TS)

    # Weighted sum over patches on the MXU (layer mean folded into the
    # contraction).  L is small & static -> plain Python loop; accumulate
    # straight into the VMEM scratch so no large f32 accumulator stays live
    # in vregs across the loop.
    for l in range(L):
        acc_ref[...] += jnp.einsum(
            'bqs,bsd->bqd', w, pt_ref[l],
            preferred_element_type=jnp.float32)[:, 0, :]

    @pl.when(s == pl.num_programs(1) - 1)
    def _finalize():
        img = acc_ref[...]
        # F.normalize(dim=1): x / max(||x||_2, 1e-12)
        nrm = jnp.sqrt(jnp.sum(img * img, axis=-1, keepdims=True))
        out_ref[...] = (img / jnp.maximum(nrm, 1e-12)).astype(out_ref.dtype)


def _largest_divisor(total, cap, align):
    """Largest divisor of `total` that is <= cap and a multiple of `align`."""
    best = None
    d = 1
    while d * d <= total:
        if total % d == 0:
            for c in (d, total // d):
                if c <= cap and c % align == 0 and (best is None or c > best):
                    best = c
        d += 1
    return best


def score_base_pooling(patch_tokens, anomaly_maps, out_dtype=jnp.float32):
    """patch_tokens: (L, N, S, D) stacked layer tokens.
       anomaly_maps: (M, N, S, 2) stacked per-map 2-class logits."""
    L, N, S, D = patch_tokens.shape
    itemsize = jnp.dtype(patch_tokens.dtype).itemsize

    # ---- generation-aware VMEM budget ----------------------------------
    try:
        vmem_cap = int(getattr(pltpu.get_tpu_info(), "vmem_capacity_bytes",
                               128 * 1024 * 1024))
    except Exception:
        vmem_cap = 128 * 1024 * 1024
    if vmem_cap >= 96 * 1024 * 1024:
        # v5e / v6e: 128 MiB VMEM per core, single TensorCore per chip.
        pt_budget = 32 * 1024 * 1024       # per patch-token buffer (x2 for pipelining)
        vmem_limit = 100 * 1024 * 1024
        two_cores = False
    else:
        # v7x: 64 MiB VMEM per core, 2 TensorCores per chip.
        pt_budget = 12 * 1024 * 1024
        vmem_limit = 56 * 1024 * 1024
        two_cores = True

    # ---- S tile ---------------------------------------------------------
    # TS is the sublane dim of the (..., TS, D) patch-token block and the lane
    # dim of the (Nb, TS) diff block: multiples of 128 satisfy both (and any
    # sub-32-bit sublane packing), or TS == full (possibly padded) S.
    S_eff = S
    if L * S * D * itemsize <= pt_budget:
        TS = S                                            # one batch row fits whole
    else:
        cap = max(pt_budget // (L * D * itemsize), 128)
        TS = _largest_divisor(S, cap, 128)
        if TS is None:
            # No aligned divisor (awkward / prime S): zero-pad S instead.
            TS = max((cap // 128) * 128, 128)
            S_eff = ((S + TS - 1) // TS) * TS

    # ---- batch tile -----------------------------------------------------
    # Nb sits on the sublane axis of the (Nb, D) output and (Nb, TS) diff
    # blocks: it must be a multiple of 8 or equal to N.
    block_rows = L * TS * D * itemsize                    # bytes per batch element / block
    nb_cap = max(pt_budget // block_rows, 1)
    if two_cores and N >= 2:
        # Keep the "parallel" batch axis at extent >= 2 so both TCs get work.
        nb_cap = min(nb_cap, max(N // 2, 1))
    if nb_cap >= N:
        Nb = N
    else:
        Nb = _largest_divisor(N, nb_cap, 8)
        if Nb is None:
            Nb = N    # alignment rules force whole batch; still correct

    # ---- tiny glue ------------------------------------------------------
    # Per-patch class-1-vs-class-0 logit gap, meaned over the M anomaly maps:
    #   mean_M(l1) - mean_M(l0) == mean_M(l1 - l0).
    # Lane-dense (S last) f32; ~N*S*4 bytes, negligible next to patch tokens.
    diff = jnp.mean(anomaly_maps[..., 1] - anomaly_maps[..., 0],
                    axis=0).astype(jnp.float32)           # (N, S)
    if S_eff != S:
        pad = S_eff - S
        # Padded patches are zero, so they contribute 0 regardless of weight.
        patch_tokens = jnp.pad(patch_tokens, ((0, 0), (0, 0), (0, pad), (0, 0)))
        diff = jnp.pad(diff, ((0, 0), (0, pad)))

    grid = (N // Nb, S_eff // TS)

    cost = pl.CostEstimate(
        flops=2 * L * N * S * D,
        transcendentals=N * S,
        bytes_accessed=(L * N * S_eff * D * itemsize
                        + N * S_eff * 4
                        + N * D * jnp.dtype(out_dtype).itemsize),
    )

    out = pl.pallas_call(
        _score_pool_kernel,
        out_shape=jax.ShapeDtypeStruct((N, D), out_dtype),
        grid=grid,
        in_specs=[
            pl.BlockSpec((L, Nb, TS, D), lambda b, s: (0, b, s, 0)),
            pl.BlockSpec((Nb, TS), lambda b, s: (b, s)),
        ],
        out_specs=pl.BlockSpec((Nb, D), lambda b, s: (b, 0)),
        scratch_shapes=[pltpu.VMEM((Nb, D), jnp.float32)],
        compiler_params=pltpu.CompilerParams(
            dimension_semantics=("parallel", "arbitrary"),
            vmem_limit_bytes=vmem_limit,
        ),
        cost_estimate=cost,
    )(patch_tokens, diff)
    return out                                            # (N, D)


def _reference(patch_tokens, anomaly_maps):
    pt = jnp.mean(patch_tokens, axis=0)                   # (N, S, D)
    am = jnp.mean(anomaly_maps, axis=0)                   # (N, S, 2)
    w = jax.nn.softmax(am, axis=-1)[..., 1:2]             # (N, S, 1)
    img = jnp.sum(pt * w, axis=1)                         # (N, D)
    nrm = jnp.linalg.norm(img, axis=1, keepdims=True)
    return img / jnp.maximum(nrm, 1e-12)


if __name__ == "__main__":
    # TODO(synk): select_weights (threshold / top_k masking) is dead code in the
    # reference forward() and is intentionally not ported.
    L, M, N, S, D = 3, 2, 2, 8, 32   # layers, num anomaly maps, batch, patches, dim
    key = jax.random.PRNGKey(0)
    k1, k2 = jax.random.split(key)
    patch_tokens = jax.random.normal(k1, (L, N, S, D), dtype=jnp.float32)
    anomaly_maps = jax.random.normal(k2, (M, N, S, 2), dtype=jnp.float32)

    out = score_base_pooling(patch_tokens, anomaly_maps)
    out = jax.block_until_ready(out)

    ref = _reference(patch_tokens, anomaly_maps)
    assert out.shape == (N, D)
    assert jnp.allclose(out, ref, atol=1e-5, rtol=1e-5), (out, ref)
    print("KERNEL_OK")
</pallas_src>

<mosaic_0001>
module attributes {stable_mosaic.version = 11 : i64} {
  func.func @_score_pool_kernel(%arg0: i32, %arg1: i32, %arg2: memref<3x2x8x32xf32, #tpu.memory_space<vmem>>, %arg3: memref<2x8xf32, #tpu.memory_space<vmem>>, %arg4: memref<2x32xf32, #tpu.memory_space<vmem>>, %arg5: memref<2x32xf32, #tpu.memory_space<vmem>>) attributes {dimension_semantics = [#tpu.dimension_semantics<parallel>, #tpu.dimension_semantics<arbitrary>], iteration_bounds = array<i64: 1, 1>, scalar_prefetch = 0 : i64, scratch_operands = 1 : i64, tpu.core_type = #tpu.core_type<tc>, window_params = [{transform_indices = @transform_0, window_bounds = array<i64: 3, 2, 8, 32>}, {transform_indices = @transform_1, window_bounds = array<i64: 2, 8>}, {transform_indices = @transform_2, window_bounds = array<i64: 2, 32>}]} {
    %c0_i32 = arith.constant 0 : i32
    %0 = arith.cmpi eq, %arg1, %c0_i32 : i32
    %1 = arith.extui %0 : i1 to i32
    %c0_i32_0 = arith.constant 0 : i32
    %2 = arith.cmpi ne, %1, %c0_i32_0 : i32
    scf.if %2 {
      %cst_31 = arith.constant 0.000000e+00 : f32
      %36 = vector.broadcast %cst_31 : f32 to vector<2x32xf32>
      %c0_32 = arith.constant 0 : index
      %c0_33 = arith.constant 0 : index
      %37 = vector.load %arg5[%c0_32, %c0_33] : memref<2x32xf32, #tpu.memory_space<vmem>>, vector<2x32xf32>
      tpu.vector_store %arg5[%c0_32, %c0_33], %36 {strides = array<i32>} : memref<2x32xf32, #tpu.memory_space<vmem>>, vector<2x32xf32>,
    } else {
    }
    %c0 = arith.constant 0 : index
    %c0_1 = arith.constant 0 : index
    %3 = vector.load %arg3[%c0, %c0_1] : memref<2x8xf32, #tpu.memory_space<vmem>>, vector<2x8xf32>
    %cst = arith.constant 0.000000e+00 : f32
    %4 = vector.broadcast %cst : f32 to vector<2x8xf32>
    %5 = arith.subf %4, %3 : vector<2x8xf32>
    %6 = math.exp %5 : vector<2x8xf32>
    %cst_2 = arith.constant 1.000000e+00 : f32
    %7 = vector.broadcast %cst_2 : f32 to vector<2x8xf32>
    %8 = arith.addf %7, %6 : vector<2x8xf32>
    %cst_3 = arith.constant 0.333333343 : f32
    %9 = vector.broadcast %cst_3 : f32 to vector<2x8xf32>
    %10 = arith.divf %9, %8 : vector<2x8xf32>
    %11 = vector.shape_cast %10 : vector<2x8xf32> to vector<2x1x8xf32>
    %c0_4 = arith.constant 0 : index
    %c0_5 = arith.constant 0 : index
    %12 = vector.load %arg5[%c0_4, %c0_5] : memref<2x32xf32, #tpu.memory_space<vmem>>, vector<2x32xf32>
    %c0_6 = arith.constant 0 : index
    %c0_7 = arith.constant 0 : index
    %c0_8 = arith.constant 0 : index
    %c0_9 = arith.constant 0 : index
    %13 = vector.load %arg2[%c0_6, %c0_7, %c0_8, %c0_9] : memref<3x2x8x32xf32, #tpu.memory_space<vmem>>, vector<1x2x8x32xf32>
    %14 = vector.shape_cast %13 : vector<1x2x8x32xf32> to vector<2x8x32xf32>
    "tpu.trace_start"() <{level = 10 : i32, message = "bqs,bsd->bqd"}> : () -> ()
    %cst_10 = arith.constant dense<0.000000e+00> : vector<2x1x32xf32>
    %15 = tpu.matmul %11, %14, %cst_10 {dimension_numbers = #tpu.dot_dimension_numbers<[2], [1], [1], [2], [0, 0, 0, 1, 1, 2], [0], [0]>} : vector<2x1x8xf32>, vector<2x8x32xf32>, vector<2x1x32xf32> -> vector<2x1x32xf32>
    "tpu.trace_stop"() : () -> ()
    %16 = vector.shape_cast %15 : vector<2x1x32xf32> to vector<2x32xf32>
    %17 = arith.addf %12, %16 : vector<2x32xf32>
    %c0_11 = arith.constant 0 : index
    %c0_12 = arith.constant 0 : index
    %18 = vector.load %arg5[%c0_11, %c0_12] : memref<2x32xf32, #tpu.memory_space<vmem>>, vector<2x32xf32>
    tpu.vector_store %arg5[%c0_11, %c0_12], %17 {strides = array<i32>} : memref<2x32xf32, #tpu.memory_space<vmem>>, vector<2x32xf32>,
    %c0_13 = arith.constant 0 : index
    %c0_14 = arith.constant 0 : index
    %19 = vector.load %arg5[%c0_13, %c0_14] : memref<2x32xf32, #tpu.memory_space<vmem>>, vector<2x32xf32>
    %c1 = arith.constant 1 : index
    %c0_15 = arith.constant 0 : index
    %c0_16 = arith.constant 0 : index
    %c0_17 = arith.constant 0 : index
    %20 = vector.load %arg2[%c1, %c0_15, %c0_16, %c0_17] : memref<3x2x8x32xf32, #tpu.memory_space<vmem>>, vector<1x2x8x32xf32>
    %21 = vector.shape_cast %20 : vector<1x2x8x32xf32> to vector<2x8x32xf32>
    "tpu.trace_start"() <{level = 10 : i32, message = "bqs,bsd->bqd"}> : () -> ()
    %cst_18 = arith.constant dense<0.000000e+00> : vector<2x1x32xf32>
    %22 = tpu.matmul %11, %21, %cst_18 {dimension_numbers = #tpu.dot_dimension_numbers<[2], [1], [1], [2], [0, 0, 0, 1, 1, 2], [0], [0]>} : vector<2x1x8xf32>, vector<2x8x32xf32>, vector<2x1x32xf32> -> vector<2x1x32xf32>
    "tpu.trace_stop"() : () -> ()
    %23 = vector.shape_cast %22 : vector<2x1x32xf32> to vector<2x32xf32>
    %24 = arith.addf %19, %23 : vector<2x32xf32>
    %c0_19 = arith.constant 0 : index
    %c0_20 = arith.constant 0 : index
    %25 = vector.load %arg5[%c0_19, %c0_20] : memref<2x32xf32, #tpu.memory_space<vmem>>, vector<2x32xf32>
    tpu.vector_store %arg5[%c0_19, %c0_20], %24 {strides = array<i32>} : memref<2x32xf32, #tpu.memory_space<vmem>>, vector<2x32xf32>,
    %c0_21 = arith.constant 0 : index
    %c0_22 = arith.constant 0 : index
    %26 = vector.load %arg5[%c0_21, %c0_22] : memref<2x32xf32, #tpu.memory_space<vmem>>, vector<2x32xf32>
    %c2 = arith.constant 2 : index
    %c0_23 = arith.constant 0 : index
    %c0_24 = arith.constant 0 : index
    %c0_25 = arith.constant 0 : index
    %27 = vector.load %arg2[%c2, %c0_23, %c0_24, %c0_25] : memref<3x2x8x32xf32, #tpu.memory_space<vmem>>, vector<1x2x8x32xf32>
    %28 = vector.shape_cast %27 : vector<1x2x8x32xf32> to vector<2x8x32xf32>
    "tpu.trace_start"() <{level = 10 : i32, message = "bqs,bsd->bqd"}> : () -> ()
    %cst_26 = arith.constant dense<0.000000e+00> : vector<2x1x32xf32>
    %29 = tpu.matmul %11, %28, %cst_26 {dimension_numbers = #tpu.dot_dimension_numbers<[2], [1], [1], [2], [0, 0, 0, 1, 1, 2], [0], [0]>} : vector<2x1x8xf32>, vector<2x8x32xf32>, vector<2x1x32xf32> -> vector<2x1x32xf32>
    "tpu.trace_stop"() : () -> ()
    %30 = vector.shape_cast %29 : vector<2x1x32xf32> to vector<2x32xf32>
    %31 = arith.addf %26, %30 : vector<2x32xf32>
    %c0_27 = arith.constant 0 : index
    %c0_28 = arith.constant 0 : index
    %32 = vector.load %arg5[%c0_27, %c0_28] : memref<2x32xf32, #tpu.memory_space<vmem>>, vector<2x32xf32>
    tpu.vector_store %arg5[%c0_27, %c0_28], %31 {strides = array<i32>} : memref<2x32xf32, #tpu.memory_space<vmem>>, vector<2x32xf32>,
    %c0_i32_29 = arith.constant 0 : i32
    %33 = arith.cmpi eq, %arg1, %c0_i32_29 : i32
    %34 = arith.extui %33 : i1 to i32
    %c0_i32_30 = arith.constant 0 : i32
    %35 = arith.cmpi ne, %34, %c0_i32_30 : i32
    scf.if %35 {
      %c0_31 = arith.constant 0 : index
      %c0_32 = arith.constant 0 : index
      %36 = vector.load %arg5[%c0_31, %c0_32] : memref<2x32xf32, #tpu.memory_space<vmem>>, vector<2x32xf32>
      %37 = arith.mulf %36, %36 : vector<2x32xf32>
      %cst_33 = arith.constant dense<0.000000e+00> : vector<2xf32>
      %38 = vector.multi_reduction <add>, %37, %cst_33 [1] : vector<2x32xf32> to vector<2xf32>
      %39 = vector.shape_cast %38 : vector<2xf32> to vector<2x1xf32>
      %40 = math.sqrt %39 : vector<2x1xf32>
      %cst_34 = arith.constant 9.99999996E-13 : f32
      %41 = vector.broadcast %cst_34 : f32 to vector<2x1xf32>
      %42 = arith.maximumf %40, %41 : vector<2x1xf32>
      %43 = vector.broadcast %42 : vector<2x1xf32> to vector<2x32xf32>
      %44 = arith.divf %36, %43 : vector<2x32xf32>
      %c0_35 = arith.constant 0 : index
      %c0_36 = arith.constant 0 : index
      %45 = vector.load %arg4[%c0_35, %c0_36] : memref<2x32xf32, #tpu.memory_space<vmem>>, vector<2x32xf32>
      tpu.vector_store %arg4[%c0_35, %c0_36], %44 {strides = array<i32>} : memref<2x32xf32, #tpu.memory_space<vmem>>, vector<2x32xf32>,
    } else {
    }
    return
  }
  func.func @transform_0(%arg0: i32, %arg1: i32) -> (i32, i32, i32, i32) {
    %c0_i32 = arith.constant 0 : i32
    %c0_i32_0 = arith.constant 0 : i32
    %c0_i32_1 = arith.constant 0 : i32
    return %c0_i32, %arg0, %arg1, %c0_i32_0 : i32, i32, i32, i32
  }
  func.func @transform_1(%arg0: i32, %arg1: i32) -> (i32, i32) {
    %c0_i32 = arith.constant 0 : i32
    return %arg0, %arg1 : i32, i32
  }
  func.func @transform_2(%arg0: i32, %arg1: i32) -> (i32, i32) {
    %c0_i32 = arith.constant 0 : i32
    %c0_i32_0 = arith.constant 0 : i32
    return %arg0, %c0_i32 : i32, i32
  }
}

</mosaic_0001>

<llo_original>
// kernel: tpu_custom_call.1
$region0: #{tpu_custom_call.1}
  #allocation0 [shape = 'u32[]', space=smem, size = 0x4, offset = 0x4, fixed_abs, tag = 'smem constant byte address 0x4 - core index']
  #allocation1 [shape = 'u32[72,128]{1,0:T(1,128)}', space=vmem, size = 0x9000, scoped, tag = 'internal scratch']
  #allocation2 [shape = 'f32[2,32]{1,0:T(2,128)}', space=vmem, size = 0x400, scoped, tag = 'scratch operand']
  %s0 = inlined_call_operand.hbm [shape: f32[3,2,8,32], index: 0, kind: input, shape index: {}]
  %s1 = inlined_call_operand.hbm [shape: f32[2,8], index: 1, kind: input, shape index: {}]
  %s2 = inlined_call_operand.hbm [shape: f32[2,32], index: 2, kind: output, shape index: {}]
  %s3 = sld [smem:[#allocation0]]
  $region34: #{tpu_custom_call.1} parent=0
    _
  %s5 = ssub.s32 1, %s3
  %s6 = scalar_select 0, %s5, %s3
  $region1: #{tpu_custom_call.1} parent=0
    #allocation3 [shape = 'u8[24576]{0}', space=vmem, size = 0x6000, scoped, tag = 'input window, operand 0, single buffered']
    #allocation4 [shape = 's32[1]{0}', space=sflag, size = 0x4, scoped, tag = 'scoped memory for tpu_custom_call.1']
    #allocation5 [shape = 's32[1]{0}', space=sflag, size = 0x4, scoped, tag = 'scoped memory for tpu_custom_call.1']
    #allocation6 [shape = 'u8[1024]{0}', space=vmem, size = 0x400, scoped, tag = 'input window, operand 1, single buffered']
    #allocation7 [shape = 's32[1]{0}', space=sflag, size = 0x4, scoped, tag = 'scoped memory for tpu_custom_call.1']
    #allocation8 [shape = 'u8[1024]{0}', space=vmem, size = 0x400, scoped, tag = 'output window, operand 0, single buffered']
    %7 = vsyncpa [#allocation4], 0
    %8 = vsyncpa [#allocation7], 0
    %9 = vsyncpa [#allocation5], 0
    // Predicated region
    $region2: #{tpu_custom_call.1} parent=1 // pred_check
      _
    $region3: #{tpu_custom_call.1} parent=1 // pred_check_branch
      %11 = sbr.rel (0) target = $region5
    $region4: #{tpu_custom_call.1} parent=1 // pred_region
      %13 = vsyncadd [#allocation4], 0
      %s14 = sshll.u32 %s0, 4
      %s15 = int_to_ptr.hbm [resolvable:$true] %s14
      %s16 = sshll.u32 [#allocation3], 4
      %s17 = int_to_ptr.vmem [resolvable:$true] %s16
      %22 = dma.hbm_to_vmem [thread:$0]  %s15, 768, %s17, [#allocation4], 128, 128, 8
    $region5: #{tpu_custom_call.1} parent=1 // pred_fallthru
      _
    // Predicated region
    $region6: #{tpu_custom_call.1} parent=1 // pred_check
      _
    $region7: #{tpu_custom_call.1} parent=1 // pred_check_branch
      %24 = sbr.rel (0) target = $region9
    $region8: #{tpu_custom_call.1} parent=1 // pred_region
      %26 = vsyncadd [#allocation7], 0
      %s28 = sshll.u32 %s1, 4
      %s29 = int_to_ptr.hbm [resolvable:$true] %s28
      %s30 = sshll.u32 [#allocation6], 4
      %s31 = int_to_ptr.vmem [resolvable:$true] %s30
      %33 = dma.hbm_to_vmem [thread:$0]  %s29, 32, %s31, [#allocation7]
    $region9: #{tpu_custom_call.1} parent=1 // pred_fallthru
      _
    // Predicated region
    $region10: #{tpu_custom_call.1} parent=1 // pred_check
      _
    $region11: #{tpu_custom_call.1} parent=1 // pred_check_branch
      %35 = sbr.rel (0) target = $region13
    $region12: #{tpu_custom_call.1} parent=1 // pred_region
      %37 = dma.done [#allocation4], 768
    $region13: #{tpu_custom_call.1} parent=1 // pred_fallthru
      _
    // Predicated region
    $region14: #{tpu_custom_call.1} parent=1 // pred_check
      _
    $region15: #{tpu_custom_call.1} parent=1 // pred_check_branch
      %39 = sbr.rel (0) target = $region17
    $region16: #{tpu_custom_call.1} parent=1 // pred_region
      %41 = dma.done [#allocation7], 32
    $region17: #{tpu_custom_call.1} parent=1 // pred_fallthru
      _
    %p42 = scmp.eq.s32.totalorder 0, 0
    // Predicated region
    $region18: #{tpu_custom_call.1} parent=1 // pred_check
      %p43 = pneg %p42
    $region19: #{tpu_custom_call.1} parent=1 // pred_check_branch
      %45 = sbr.rel (%p43) target = $region21
    $region20: #{tpu_custom_call.1} parent=1 // pred_region
      %vm46 = vcmask 254976
      %47 = vst.msk [vmem:[#allocation2] sm:$0x3] %vm46, 0.0
    $region21: #{tpu_custom_call.1} parent=1 // pred_fallthru
      _
    %v48 = vld [vmem:[#allocation6] sm:$0x3]
    %v49 = vsub.f32 0.0, %v48
    %v50 = vmul.f32 %v49, 1.442695
    %v51 = vpow.pop %v50
    %v52 = vadd.f32 %v51, 1.0
    %v53 = vrcp.pop %v52
    %v54 = vmul.f32 %v52, %v53
    %v55 = vsub.f32 1.0, %v54
    %v56 = vmul.f32 %v53, %v55
    %v57 = vadd.f32 %v53, %v56
    %vm58 = vweird.f32 %v52
    %vm59 = vweird.f32 %v53
    %vm60 = vmor %vm58, %vm59
    %v61 = vsel %vm60, %v53, %v57
    %v62 = vand.u32 2147483647, %v52
    %vm63 = vcmp.eq.f32.partialorder %v62, 8.507059e+37
    %v64 = vand.u32 %v52, 2147483648
    %v65 = vor.u32 1.1754944e-38, %v64
    %v66 = vsel %vm63, %v65, %v61
    %v67 = vmul.f32 0.33333334, %v66
    %v69 = vrot.slane %v67, 1
    %v70 = vld [vmem:[#allocation2] sm:$0x3]
    %v71 = vld [vmem:[#allocation3] sm:$0xff]
    %v72 = vld [vmem:[#allocation3 + $0x8] sm:$0xff]
    %vm73 = vcmask 64512
    %v74 = vsel %vm73, %v67, 0
    %76 = vmatpush.msra.mxu0 0.0
    %77 = vmatpush.msra.mxu0 0.0
    %78 = vmatpush.msra.mxu0 0.0
    %79 = vmatpush.msra.mxu0 0.0
    %80 = vmatpush.msra.mxu0 0.0
    %81 = vmatpush.msra.mxu0 0.0
    %82 = vmatpush.msra.mxu0 0.0
    %83 = vmatpush.msra.mxu0 0.0
    %84 = vmatpush.msra.mxu0 0.0
    %85 = vmatpush.msra.mxu0 0.0
    %86 = vmatpush.msra.mxu0 0.0
    %87 = vmatpush.msra.mxu0 0.0
    %88 = vmatpush.msra.mxu0 0.0
    %89 = vmatpush.msra.mxu0 0.0
    %90 = vmatpush.msra.mxu0 0.0
    %91 = vmatpush.msra.mxu0 %v71
    %92 = vmatmul.f32.gmra.mxu0 %v74
    %v93 = vpop.f32.mrf.mxu0
    %v94 = vadd.f32 0.0, %v93
    %95 = vdwg.mxu0
    %v96 = vsel %vm73, %v69, 0
    %98 = vmatpush.msra.mxu0 0.0
    %99 = vmatpush.msra.mxu0 0.0
    %100 = vmatpush.msra.mxu0 0.0
    %101 = vmatpush.msra.mxu0 0.0
    %102 = vmatpush.msra.mxu0 0.0
    %103 = vmatpush.msra.mxu0 0.0
    %104 = vmatpush.msra.mxu0 0.0
    %105 = vmatpush.msra.mxu0 0.0
    %106 = vmatpush.msra.mxu0 0.0
    %107 = vmatpush.msra.mxu0 0.0
    %108 = vmatpush.msra.mxu0 0.0
    %109 = vmatpush.msra.mxu0 0.0
    %110 = vmatpush.msra.mxu0 0.0
    %111 = vmatpush.msra.mxu0 0.0
    %112 = vmatpush.msra.mxu0 0.0
    %113 = vmatpush.msra.mxu0 %v72
    %114 = vmatmul.f32.gmra.mxu0 %v96
    %v115 = vpop.f32.mrf.mxu0
    %v116 = vadd.f32 0.0, %v115
    %117 = vdwg.mxu0
    %v120 = vrot.slane %v116, 7
    %vm121 = vcmask 1041409
    %v122 = vsel %vm121, %v120, %v94
    %v124 = vadd.f32 %v70, %v122
    %vm125 = vcmask 254976
    %126 = vst.msk [vmem:[#allocation2] sm:$0x3] %vm125, %v124
    %v127 = vld [vmem:[#allocation2] sm:$0x3]
    %s128 = scalar_lea.vmem [#allocation3], 16
    %v129 = vld [vmem:[%s128] sm:$0xff]
    %v130 = vld [vmem:[%s128 + $0x8] sm:$0xff]
    %131 = vmatpush.msra.mxu0 0.0
    %132 = vmatpush.msra.mxu0 0.0
    %133 = vmatpush.msra.mxu0 0.0
    %134 = vmatpush.msra.mxu0 0.0
    %135 = vmatpush.msra.mxu0 0.0
    %136 = vmatpush.msra.mxu0 0.0
    %137 = vmatpush.msra.mxu0 0.0
    %138 = vmatpush.msra.mxu0 0.0
    %139 = vmatpush.msra.mxu0 0.0
    %140 = vmatpush.msra.mxu0 0.0
    %141 = vmatpush.msra.mxu0 0.0
    %142 = vmatpush.msra.mxu0 0.0
    %143 = vmatpush.msra.mxu0 0.0
    %144 = vmatpush.msra.mxu0 0.0
    %145 = vmatpush.msra.mxu0 0.0
    %146 = vmatpush.msra.mxu0 %v129
    %147 = vmatmul.f32.gmra.mxu0 %v74
    %v148 = vpop.f32.mrf.mxu0
    %v149 = vadd.f32 0.0, %v148
    %150 = vdwg.mxu0
    %151 = vmatpush.msra.mxu0 0.0
    %152 = vmatpush.msra.mxu0 0.0
    %153 = vmatpush.msra.mxu0 0.0
    %154 = vmatpush.msra.mxu0 0.0
    %155 = vmatpush.msra.mxu0 0.0
    %156 = vmatpush.msra.mxu0 0.0
    %157 = vmatpush.msra.mxu0 0.0
    %158 = vmatpush.msra.mxu0 0.0
    %159 = vmatpush.msra.mxu0 0.0
    %160 = vmatpush.msra.mxu0 0.0
    %161 = vmatpush.msra.mxu0 0.0
    %162 = vmatpush.msra.mxu0 0.0
    %163 = vmatpush.msra.mxu0 0.0
    %164 = vmatpush.msra.mxu0 0.0
    %165 = vmatpush.msra.mxu0 0.0
    %166 = vmatpush.msra.mxu0 %v130
    %167 = vmatmul.f32.gmra.mxu0 %v96
    %v168 = vpop.f32.mrf.mxu0
    %v169 = vadd.f32 0.0, %v168
    %170 = vdwg.mxu0
    %v173 = vrot.slane %v169, 7
    %v174 = vsel %vm121, %v173, %v149
    %v176 = vadd.f32 %v127, %v174
    %177 = vst.msk [vmem:[#allocation2] sm:$0x3] %vm125, %v176
    %v178 = vld [vmem:[#allocation2] sm:$0x3]
    %s179 = scalar_lea.vmem [#allocation3], 32
    %v180 = vld [vmem:[%s179] sm:$0xff]
    %v181 = vld [vmem:[%s179 + $0x8] sm:$0xff]
    %182 = vmatpush.msra.mxu0 0.0
    %183 = vmatpush.msra.mxu0 0.0
    %184 = vmatpush.msra.mxu0 0.0
    %185 = vmatpush.msra.mxu0 0.0
    %186 = vmatpush.msra.mxu0 0.0
    %187 = vmatpush.msra.mxu0 0.0
    %188 = vmatpush.msra.mxu0 0.0
    %189 = vmatpush.msra.mxu0 0.0
    %190 = vmatpush.msra.mxu0 0.0
    %191 = vmatpush.msra.mxu0 0.0
    %192 = vmatpush.msra.mxu0 0.0
    %193 = vmatpush.msra.mxu0 0.0
    %194 = vmatpush.msra.mxu0 0.0
    %195 = vmatpush.msra.mxu0 0.0
    %196 = vmatpush.msra.mxu0 0.0
    %197 = vmatpush.msra.mxu0 %v180
    %198 = vmatmul.f32.gmra.mxu0 %v74
    %v199 = vpop.f32.mrf.mxu0
    %v200 = vadd.f32 0.0, %v199
    %201 = vdwg.mxu0
    %202 = vmatpush.msra.mxu0 0.0
    %203 = vmatpush.msra.mxu0 0.0
    %204 = vmatpush.msra.mxu0 0.0
    %205 = vmatpush.msra.mxu0 0.0
    %206 = vmatpush.msra.mxu0 0.0
    %207 = vmatpush.msra.mxu0 0.0
    %208 = vmatpush.msra.mxu0 0.0
    %209 = vmatpush.msra.mxu0 0.0
    %210 = vmatpush.msra.mxu0 0.0
    %211 = vmatpush.msra.mxu0 0.0
    %212 = vmatpush.msra.mxu0 0.0
    %213 = vmatpush.msra.mxu0 0.0
    %214 = vmatpush.msra.mxu0 0.0
    %215 = vmatpush.msra.mxu0 0.0
    %216 = vmatpush.msra.mxu0 0.0
    %217 = vmatpush.msra.mxu0 %v181
    %218 = vmatmul.f32.gmra.mxu0 %v96
    %v219 = vpop.f32.mrf.mxu0
    %v220 = vadd.f32 0.0, %v219
    %221 = vdwg.mxu0
    %v224 = vrot.slane %v220, 7
    %v225 = vsel %vm121, %v224, %v200
    %v227 = vadd.f32 %v178, %v225
    %228 = vst.msk [vmem:[#allocation2] sm:$0x3] %vm125, %v227
    // Predicated region
    $region22: #{tpu_custom_call.1} parent=1 // pred_check
      %p229 = pneg %p42
    $region23: #{tpu_custom_call.1} parent=1 // pred_check_branch
      %231 = sbr.rel (%p229) target = $region25
    $region24: #{tpu_custom_call.1} parent=1 // pred_region
      %v232 = vld [vmem:[#allocation2] sm:$0x3]
      %v233 = vmul.f32 %v232, %v232
      %v234 = vsel %vm125, %v233, 0.0
      %235 = vadd.xlane.f32.xlu0 %v234
      %v236 = vpop.xlane.xlu0 %235
      %v237 = vrsqrt.pop %v236
      %v238 = vmul.f32 %v237, %v236
      %v239 = vmul.f32 %v238, %v237
      %v240 = vmul.f32 0.5, %v239
      %v241 = vsub.f32 1.5, %v240
      %v242 = vmul.f32 %v237, %v241
      %v243 = vmul.f32 %v236, %v242
      %vm244 = vcmp.eq.f32.partialorder %v236, inf
      %v245 = vsel %vm244, %v236, %v243
      %vm246 = vcmp.eq.f32.partialorder %v236, 0.0
      %v247 = vand.u32 %v236, 2147483648
      %v248 = vsel %vm246, %v247, %v245
      %v249 = vmax.f32 %v248, 1e-12
      %v250 = vrcp.pop %v249
      %v251 = vmul.f32 %v249, %v250
      %v252 = vsub.f32 1.0, %v251
      %v253 = vmul.f32 %v250, %v252
      %v254 = vadd.f32 %v250, %v253
      %vm255 = vweird.f32 %v249
      %vm256 = vweird.f32 %v250
      %vm257 = vmor %vm255, %vm256
      %v258 = vsel %vm257, %v250, %v254
      %v259 = vand.u32 2147483647, %v249
      %vm260 = vcmp.eq.f32.partialorder %v259, 8.507059e+37
      %v261 = vand.u32 %v249, 2147483648
      %v262 = vor.u32 1.1754944e-38, %v261
      %v263 = vsel %vm260, %v262, %v258
      %v264 = vmul.f32 %v232, %v263
      %265 = vst.msk [vmem:[#allocation8] sm:$0x3] %vm125, %v264
    $region25: #{tpu_custom_call.1} parent=1 // pred_fallthru
      _
    // Predicated region
    $region26: #{tpu_custom_call.1} parent=1 // pred_check
      _
    $region27: #{tpu_custom_call.1} parent=1 // pred_check_branch
      %267 = sbr.rel (0) target = $region29
    $region28: #{tpu_custom_call.1} parent=1 // pred_region
      %269 = vsyncadd [#allocation5], 0
      %s271 = sshll.u32 [#allocation8], 4
      %s272 = int_to_ptr.vmem [resolvable:$true] %s271
      %s273 = sshll.u32 %s2, 4
      %s274 = int_to_ptr.hbm [resolvable:$true] %s273
      %276 = dma.vmem_to_hbm [thread:$0]  %s272, 32, %s274, [#allocation5]
    $region29: #{tpu_custom_call.1} parent=1 // pred_fallthru
      _
    // Predicated region
    $region30: #{tpu_custom_call.1} parent=1 // pred_check
      _
    $region31: #{tpu_custom_call.1} parent=1 // pred_check_branch
      %278 = sbr.rel (0) target = $region33
    $region32: #{tpu_custom_call.1} parent=1 // pred_region
      %280 = dma.done [#allocation5], 32
    $region33: #{tpu_custom_call.1} parent=1 // pred_fallthru
      _
    %281 = vsyncpa [#allocation4], 1
    %282 = vsyncpa [#allocation7], 1
    %283 = vsyncpa [#allocation5], 1

</llo_original>
